<compile_context>
chip_gen: v7x
topology: tpu7x:2x2x1
jax: 0.10.0
libtpu: 0.0.40
codegen_flags: <defaults>
</compile_context>

<pallas_src>
import functools

import jax
import jax.numpy as jnp
from jax import lax
from jax.experimental import pallas as pl
from jax.experimental.pallas import tpu as pltpu


@functools.lru_cache(maxsize=None)
def _vmem_limit_bytes():
    """Generation-aware scoped-VMEM limit (large on 128-MiB parts, conservative on v7x)."""
    try:
        cap = int(pltpu.get_tpu_info().vmem_capacity_bytes)
    except Exception:
        return 32 * 1024 * 1024          # safe everywhere
    if cap >= 96 * 1024 * 1024:
        return 96 * 1024 * 1024          # v5e / v6e (128 MiB physical)
    return 48 * 1024 * 1024              # v7x (64 MiB physical)


def _pick_tile(total, max_tile):
    """Largest tile <= max_tile that divides `total` and keeps 8-sublane alignment."""
    if total <= max_tile:
        return total
    for t in range(max_tile, 0, -1):
        if total % t == 0 and t % 8 == 0:
            return t
    # TODO(synk): pad awkward sizes wrapper-side instead of falling back to one big block.
    return total


# ----------------------------------------------------------------------------
# Pallas kernel 1: per-batch gaussian density + DensityNet (row-tiled, no accumulator)
# ----------------------------------------------------------------------------
def _density_kernel(xyz_ref, w0_ref, b0_ref, w1_ref, b1_ref, w2_ref, b2_ref, out_ref,
                    *, tn, neg_inv_2bw2, post_scale):
    nt = pl.program_id(1)
    start = pl.multiple_of(nt * tn, tn)

    xa = xyz_ref[...]                                                   # [N, 3] resident
    xr = xyz_ref[pl.ds(start, tn), :]                                   # [TN, 3] free VMEM slice

    # lane-dense [TN, N] squared-distance block (N on lanes), dot on the MXU.
    xx = lax.dot_general(xr, xa, (((1,), (1,)), ((), ())),
                         preferred_element_type=jnp.float32)            # [TN, N]
    sq_r = jnp.sum(xr * xr, axis=-1, keepdims=True)                     # [TN, 1]
    sq_a = jnp.sum(xa * xa, axis=-1)[None, :]                           # [1, N]
    # clamp tiny negative values from fp cancellation (true distances are >= 0)
    dist = jnp.maximum(sq_r + sq_a - 2.0 * xx, 0.0)                     # [TN, N]

    # TODO(synk): on v6e/v7x this exp is the EUP-bound op at large N and could run in bf16;
    #             kept f32 for numerical fidelity with the reference.
    g = jnp.exp(dist * neg_inv_2bw2)                                    # gaussian (unscaled)
    d = jnp.sum(g, axis=-1, keepdims=True) * post_scale                 # [TN, 1] xyz_density

    # DensityNet: Conv1d(1x1) + fused eval-mode BN.  Faithful to the reference bug:
    # "i == len(self.mlp_convs)" is never true, so every layer ends with ReLU.
    h = jnp.maximum(d * w0_ref[...] + b0_ref[...], 0.0)                 # [TN, H0]
    h = jnp.maximum(jnp.dot(h, w1_ref[...],
                            preferred_element_type=jnp.float32) + b1_ref[...], 0.0)
    h = jnp.maximum(jnp.dot(h, w2_ref[...],
                            preferred_element_type=jnp.float32) + b2_ref[...], 0.0)
    out_ref[...] = h                                                    # [TN, 1]


def compute_density_scale(xyz, dnet_params, bandwidth, *, tn_max=512):
    """xyz: [B, N, 3] -> density_scale [B, N, 1]."""
    B, N, _ = xyz.shape
    (w0, b0), (w1, b1), (w2, b2) = dnet_params
    TN = _pick_tile(N, tn_max)

    kernel = functools.partial(
        _density_kernel,
        tn=TN,
        neg_inv_2bw2=-1.0 / (2.0 * bandwidth * bandwidth),
        post_scale=1.0 / (float(N) * 2.5 * bandwidth),
    )

    def wspec(a):
        nd = a.ndim
        return pl.BlockSpec(a.shape, lambda b, nt, nd=nd: (0,) * nd)

    out = pl.pallas_call(
        kernel,
        out_shape=jax.ShapeDtypeStruct((B, N, 1), jnp.float32),
        grid=(B, N // TN),
        in_specs=[
            # single xyz input, resident per batch (row tile sliced in-kernel)
            pl.BlockSpec((None, N, 3), lambda b, nt: (b, 0, 0)),
            wspec(w0), wspec(b0), wspec(w1), wspec(b1), wspec(w2), wspec(b2),
        ],
        out_specs=pl.BlockSpec((None, TN, 1), lambda b, nt: (b, nt, 0)),
        compiler_params=pltpu.CompilerParams(
            dimension_semantics=("parallel", "parallel"),
            vmem_limit_bytes=_vmem_limit_bytes()),
    )(xyz, w0, b0, w1, b1, w2, b2)
    return out


# ----------------------------------------------------------------------------
# Pallas kernel 2: PointConv core over a tile of S_TILE sampled points
# ----------------------------------------------------------------------------
def _pointconv_kernel(x_ref, mw0_ref, mb0_ref, mw1_ref, mb1_ref,
                      vw0_ref, vb0_ref, vw1_ref, vb1_ref, vw2_ref, vb2_ref,
                      wl_ref, bl_ref, out_ref, *, k):
    skn, c_all = x_ref.shape                 # [S_T*K, C_all], channels = [new_points | density]
    s_t = skn // k
    cm = mw1_ref.shape[1]
    wc = vw2_ref.shape[1]

    x = x_ref[...]                                                      # single lane-dense stream

    # feature MLP (Conv2d 1x1 + fused eval-BN + ReLU); zero-extended first-layer weight
    # ignores the density channel, so no in-kernel channel slicing is needed.
    f = jnp.maximum(jnp.dot(x, mw0_ref[...],
                            preferred_element_type=jnp.float32) + mb0_ref[...], 0.0)
    f = jnp.maximum(jnp.dot(f, mw1_ref[...],
                            preferred_element_type=jnp.float32) + mb1_ref[...], 0.0)   # [S_T*K, CM]

    # WeightNet on local coordinates; zero-extended first layer reads only the 3 xyz channels.
    w = jnp.maximum(jnp.dot(x, vw0_ref[...],
                            preferred_element_type=jnp.float32) + vb0_ref[...], 0.0)
    w = jnp.maximum(jnp.dot(w, vw1_ref[...],
                            preferred_element_type=jnp.float32) + vb1_ref[...], 0.0)
    w = jnp.maximum(jnp.dot(w, vw2_ref[...],
                            preferred_element_type=jnp.float32) + vb2_ref[...], 0.0)   # [S_T*K, WC]

    # density (last channel) folded into the WeightNet operand (algebraically identical to
    # scaling the features, one fewer lane-padded broadcast multiply).
    wd = w * x[:, c_all - 1:c_all]                                                     # [S_T*K, WC]

    # Neighbour aggregation on the MXU: agg[s, c, w] = sum_k f[s, k, c] * wd[s, k, w]
    # (batched matmul over K, same canonical pattern as flash-attention's 'bqk,bkd->bqd').
    f3t = jnp.swapaxes(f.reshape(s_t, k, cm), 1, 2)                                    # [S_T, CM, K]
    wd3 = wd.reshape(s_t, k, wc)                                                       # [S_T, K, WC]
    agg = jnp.einsum("sck,skw->scw", f3t, wd3,
                     preferred_element_type=jnp.float32)                               # [S_T, CM, WC]

    # flatten in the reference (c*WC + w) order; fused Linear + BatchNorm1d + ReLU is one matmul.
    flat = agg.reshape(s_t, cm * wc)                                                   # [S_T, CM*WC]
    out = jnp.dot(flat, wl_ref[...], preferred_element_type=jnp.float32) + bl_ref[...]
    out_ref[...] = jnp.maximum(out, 0.0)                                               # [S_T, CO]


def pointconv_core(grouped_all, params, *, s_tile_max=256):
    """grouped_all [B, S, K, Cin+1] (channels = [gxyz_norm | points | density]) -> [B, S, CO]."""
    B, S, K, C_all = grouped_all.shape
    (mw0, mb0), (mw1, mb1) = params["mlp"]          # kernel specialized to len(mlp) == 2
    (vw0, vb0), (vw1, vb1), (vw2, vb2) = params["wnet"]
    wl, bl = params["linear"]                       # [CM*WC, CO] (reference c*WC+w row order)
    CO = wl.shape[1]

    # zero-extend first-layer weights so the kernel never slices channels before a matmul
    mw0_ext = jnp.concatenate(
        [mw0, jnp.zeros((C_all - mw0.shape[0], mw0.shape[1]), mw0.dtype)], axis=0)
    vw0_ext = jnp.concatenate(
        [vw0, jnp.zeros((C_all - vw0.shape[0], vw0.shape[1]), vw0.dtype)], axis=0)

    S_TILE = _pick_tile(S, s_tile_max)
    n_st = S // S_TILE
    x_flat = grouped_all.reshape(B, S * K, C_all)   # pre-flattened: kernel matmuls need no reshape

    kernel = functools.partial(_pointconv_kernel, k=K)

    def wspec(a):
        nd = a.ndim
        return pl.BlockSpec(a.shape, lambda b, st, nd=nd: (0,) * nd)

    out = pl.pallas_call(
        kernel,
        out_shape=jax.ShapeDtypeStruct((B, S, CO), jnp.float32),
        grid=(B, n_st),
        in_specs=[
            pl.BlockSpec((None, S_TILE * K, C_all), lambda b, st: (b, st, 0)),
            wspec(mw0_ext), wspec(mb0), wspec(mw1), wspec(mb1),
            wspec(vw0_ext), wspec(vb0), wspec(vw1), wspec(vb1), wspec(vw2), wspec(vb2),
            wspec(wl), wspec(bl),
        ],
        out_specs=pl.BlockSpec((None, S_TILE, CO), lambda b, st: (b, st, 0)),
        compiler_params=pltpu.CompilerParams(
            dimension_semantics=("parallel", "parallel"),
            vmem_limit_bytes=_vmem_limit_bytes()),
    )(x_flat, mw0_ext, mb0, mw1, mb1, vw0_ext, vb0, vw1, vb1, vw2, vb2, wl, bl)
    # TODO(synk): if CO stays < 128 in real configs, present the output lane-dense
    #             ([B, S//g, g*CO]) wrapper-side to get unmasked stores on v5e.
    return out


# ----------------------------------------------------------------------------
# Plain-JAX glue: sampling / grouping (data-dependent gathers)
# ----------------------------------------------------------------------------
def square_distance(src, dst):
    d = -2.0 * jnp.einsum("bnc,bmc->bnm", src, dst)
    d = d + jnp.sum(src ** 2, -1)[:, :, None]
    d = d + jnp.sum(dst ** 2, -1)[:, None, :]
    return d


def index_points(points, idx):
    return jax.vmap(lambda p, i: p[i])(points, idx)


def farthest_point_sample(xyz, npoint):
    # TODO(synk): reference uses torch.randint for the initial farthest index;
    # we deterministically start from index 0.
    B, N, _ = xyz.shape

    def body(i, state):
        distance, farthest, centroids = state
        centroids = centroids.at[:, i].set(farthest)
        centroid = index_points(xyz, farthest[:, None])          # [B, 1, 3]
        dist = jnp.sum((xyz - centroid) ** 2, -1)                # [B, N]
        distance = jnp.minimum(distance, dist)
        farthest = jnp.argmax(distance, axis=-1).astype(jnp.int32)
        return distance, farthest, centroids

    state = (jnp.full((B, N), 1e10, jnp.float32),
             jnp.zeros((B,), jnp.int32),
             jnp.zeros((B, npoint), jnp.int32))
    _, _, centroids = lax.fori_loop(0, npoint, body, state)
    return centroids


def knn_point(nsample, xyz, new_xyz):
    sqrdists = square_distance(new_xyz, xyz)
    _, idx = lax.top_k(-sqrdists, nsample)
    return idx


# ----------------------------------------------------------------------------
# Parameter construction (deterministic, eval-mode BN fused into weights)
# ----------------------------------------------------------------------------
def _fuse_bn(W, b, gamma, beta, mean, var, eps=1e-5):
    scale = gamma / jnp.sqrt(var + eps)
    Wf = W * scale[None, :]
    bf = (b - mean) * scale + beta
    return Wf.astype(jnp.float32), bf[None, :].astype(jnp.float32)


def init_params(key, in_channel, mlp, hidden_wnet=(8, 8), wnet_out=16, hidden_dnet=(8, 8)):
    keys = iter(jax.random.split(key, 64))

    def init_lin(cin, cout):
        kw, kb = jax.random.split(next(keys))
        W = 0.5 * jax.random.normal(kw, (cin, cout), jnp.float32)
        b = 0.1 * jax.random.normal(kb, (cout,), jnp.float32)
        return W, b

    def init_bn(c):
        k1, k2, k3, k4 = jax.random.split(next(keys), 4)
        gamma = 1.0 + 0.1 * jax.random.normal(k1, (c,), jnp.float32)
        beta = 0.1 * jax.random.normal(k2, (c,), jnp.float32)
        mean = 0.1 * jax.random.normal(k3, (c,), jnp.float32)
        var = 1.0 + 0.1 * jnp.abs(jax.random.normal(k4, (c,), jnp.float32))
        return gamma, beta, mean, var

    def layer(cin, cout):
        W, b = init_lin(cin, cout)
        return _fuse_bn(W, b, *init_bn(cout))

    # DensityNet: 1 -> 8 -> 8 -> 1
    dnet = [layer(1, hidden_dnet[0]),
            layer(hidden_dnet[0], hidden_dnet[1]),
            layer(hidden_dnet[1], 1)]
    # feature MLP (Conv2d 1x1 stack)
    mlp_layers = []
    last = in_channel
    for c in mlp:
        mlp_layers.append(layer(last, c))
        last = c
    # WeightNet: 3 -> 8 -> 8 -> 16
    wnet = [layer(3, hidden_wnet[0]),
            layer(hidden_wnet[0], hidden_wnet[1]),
            layer(hidden_wnet[1], wnet_out)]
    # Linear(16*mlp[-1] -> mlp[-1]) fused with BatchNorm1d(mlp[-1]);
    # rows ordered (c*WC + w), exactly the reference .view flatten order.
    CM, CO, WC = mlp[-1], mlp[-1], wnet_out
    Wl, bl = init_lin(CM * WC, CO)
    Wlf, blf = _fuse_bn(Wl, bl, *init_bn(CO))
    return dict(dnet=dnet, mlp=mlp_layers, wnet=wnet, linear=(Wlf, blf))


# ----------------------------------------------------------------------------
# Full forward (mirrors PointConvDensitySetAbstraction.forward, group_all=False)
# ----------------------------------------------------------------------------
def pointconv_density_set_abstraction(xyz_b3n, points_bdn, params, *,
                                      npoint, nsample, bandwidth):
    # TODO(synk): group_all=True (sample_and_group_all) path not implemented here.
    xyz = jnp.transpose(xyz_b3n, (0, 2, 1))            # [B, N, 3]
    points = jnp.transpose(points_bdn, (0, 2, 1))      # [B, N, D]

    # Pallas kernel 1: gaussian density + DensityNet (applied to the raw global density,
    # exactly as the provided module's forward does).
    density_scale = compute_density_scale(xyz, params["dnet"], bandwidth)   # [B, N, 1]

    # sampling / grouping (glue)
    fps_idx = farthest_point_sample(xyz, npoint)                  # [B, S]
    new_xyz = index_points(xyz, fps_idx)                          # [B, S, 3]
    idx = knn_point(nsample, xyz, new_xyz)                        # [B, S, K]
    grouped_xyz = index_points(xyz, idx)                          # [B, S, K, 3]
    grouped_xyz_norm = grouped_xyz - new_xyz[:, :, None, :]
    grouped_points = index_points(points, idx)                    # [B, S, K, D]
    grouped_density = index_points(density_scale, idx)            # [B, S, K, 1]
    # one lane-dense stream for kernel 2: [gxyz_norm | points | density]
    grouped_all = jnp.concatenate(
        [grouped_xyz_norm, grouped_points, grouped_density], axis=-1)

    feat = pointconv_core(grouped_all, params)                    # [B, S, CO]
    return jnp.transpose(new_xyz, (0, 2, 1)), jnp.transpose(feat, (0, 2, 1))


# ----------------------------------------------------------------------------
# Pure-JAX reference (same fused params, same glue) — numerical sanity check only
# ----------------------------------------------------------------------------
def _reference_forward(xyz_b3n, points_bdn, params, *, npoint, nsample, bandwidth):
    xyz = jnp.transpose(xyz_b3n, (0, 2, 1))
    points = jnp.transpose(points_bdn, (0, 2, 1))
    B = xyz.shape[0]

    g = jnp.exp(-square_distance(xyz, xyz) / (2.0 * bandwidth * bandwidth)) / (2.5 * bandwidth)
    d = jnp.mean(g, axis=-1)[:, :, None]                                   # [B, N, 1]
    (w0, b0), (w1, b1), (w2, b2) = params["dnet"]
    h = jnp.maximum(d @ w0 + b0, 0.0)
    h = jnp.maximum(h @ w1 + b1, 0.0)
    dens = jnp.maximum(h @ w2 + b2, 0.0)                                    # [B, N, 1]

    fps_idx = farthest_point_sample(xyz, npoint)
    new_xyz = index_points(xyz, fps_idx)
    idx = knn_point(nsample, xyz, new_xyz)
    gxyz = index_points(xyz, idx) - new_xyz[:, :, None, :]
    gpts = index_points(points, idx)
    gdens = index_points(dens, idx)
    new_points = jnp.concatenate([gxyz, gpts], axis=-1)

    (mw0, mb0), (mw1, mb1) = params["mlp"]
    f = jnp.maximum(new_points @ mw0 + mb0, 0.0)
    f = jnp.maximum(f @ mw1 + mb1, 0.0)                                     # [B, S, K, CM]
    (vw0, vb0), (vw1, vb1), (vw2, vb2) = params["wnet"]
    w = jnp.maximum(gxyz @ vw0 + vb0, 0.0)
    w = jnp.maximum(w @ vw1 + vb1, 0.0)
    w = jnp.maximum(w @ vw2 + vb2, 0.0)                                     # [B, S, K, WC]
    agg = jnp.einsum("bskc,bskw->bscw", f * gdens, w)
    wl, bl = params["linear"]
    flat = agg.reshape(B, npoint, -1)
    out = jnp.maximum(flat @ wl + bl, 0.0)
    return jnp.transpose(new_xyz, (0, 2, 1)), jnp.transpose(out, (0, 2, 1))


if __name__ == "__main__":
    B, N, D = 2, 32, 4
    npoint, nsample = 8, 8
    in_channel = D + 3          # grouped xyz (3) + point features (D)
    mlp = [8, 16]
    bandwidth = 0.5

    key = jax.random.PRNGKey(0)
    k_xyz, k_pts, k_par = jax.random.split(key, 3)
    xyz_in = jax.random.normal(k_xyz, (B, 3, N), jnp.float32)
    pts_in = jax.random.normal(k_pts, (B, D, N), jnp.float32)

    params = init_params(k_par, in_channel, mlp)

    new_xyz, new_points = pointconv_density_set_abstraction(
        xyz_in, pts_in, params, npoint=npoint, nsample=nsample, bandwidth=bandwidth)
    jax.block_until_ready((new_xyz, new_points))
    assert new_xyz.shape == (B, 3, npoint)
    assert new_points.shape == (B, mlp[-1], npoint)

    ref_xyz, ref_points = _reference_forward(
        xyz_in, pts_in, params, npoint=npoint, nsample=nsample, bandwidth=bandwidth)
    assert jnp.allclose(new_xyz, ref_xyz, rtol=5e-3, atol=5e-3)
    assert jnp.allclose(new_points, ref_points, rtol=5e-3, atol=5e-3)
    print("KERNEL_OK")
</pallas_src>

<mosaic_0001>
module attributes {stable_mosaic.version = 11 : i64} {
  func.func @_density_kernel(%arg0: i32, %arg1: i32, %arg2: memref<1x32x3xf32, #tpu.memory_space<vmem>>, %arg3: memref<1x8xf32, #tpu.memory_space<vmem>>, %arg4: memref<1x8xf32, #tpu.memory_space<vmem>>, %arg5: memref<8x8xf32, #tpu.memory_space<vmem>>, %arg6: memref<1x8xf32, #tpu.memory_space<vmem>>, %arg7: memref<8x1xf32, #tpu.memory_space<vmem>>, %arg8: memref<1x1xf32, #tpu.memory_space<vmem>>, %arg9: memref<1x32x1xf32, #tpu.memory_space<vmem>>) attributes {dimension_semantics = [#tpu.dimension_semantics<parallel>, #tpu.dimension_semantics<parallel>], iteration_bounds = array<i64: 2, 1>, scalar_prefetch = 0 : i64, scratch_operands = 0 : i64, tpu.core_type = #tpu.core_type<tc>, window_params = [{transform_indices = @transform_0, window_bounds = array<i64: 1, 32, 3>}, {pipeline_mode = #tpu.pipeline_mode<synchronous>, transform_indices = @transform_1, window_bounds = array<i64: 1, 8>}, {pipeline_mode = #tpu.pipeline_mode<synchronous>, transform_indices = @transform_2, window_bounds = array<i64: 1, 8>}, {pipeline_mode = #tpu.pipeline_mode<synchronous>, transform_indices = @transform_3, window_bounds = array<i64: 8, 8>}, {pipeline_mode = #tpu.pipeline_mode<synchronous>, transform_indices = @transform_4, window_bounds = array<i64: 1, 8>}, {pipeline_mode = #tpu.pipeline_mode<synchronous>, transform_indices = @transform_5, window_bounds = array<i64: 8, 1>}, {pipeline_mode = #tpu.pipeline_mode<synchronous>, transform_indices = @transform_6, window_bounds = array<i64: 1, 1>}, {transform_indices = @transform_7, window_bounds = array<i64: 1, 32, 1>}]} {
    %c32_i32 = arith.constant 32 : i32
    %0 = arith.muli %arg1, %c32_i32 : i32
    %1 = tpu.assume_multiple %0, 32 : i32
    %c0 = arith.constant 0 : index
    %c0_0 = arith.constant 0 : index
    %c0_1 = arith.constant 0 : index
    %2 = vector.load %arg2[%c0, %c0_0, %c0_1] : memref<1x32x3xf32, #tpu.memory_space<vmem>>, vector<1x32x3xf32>
    %3 = vector.shape_cast %2 : vector<1x32x3xf32> to vector<32x3xf32>
    %c0_2 = arith.constant 0 : index
    %4 = arith.index_cast %1 : i32 to index
    %c0_3 = arith.constant 0 : index
    %5 = vector.load %arg2[%c0_2, %4, %c0_3] : memref<1x32x3xf32, #tpu.memory_space<vmem>>, vector<1x32x3xf32>
    %6 = vector.shape_cast %5 : vector<1x32x3xf32> to vector<32x3xf32>
    %cst = arith.constant dense<0.000000e+00> : vector<32x32xf32>
    %7 = tpu.matmul %6, %3, %cst {dimension_numbers = #tpu.dot_dimension_numbers<[1], [1], [0], [0], [0, 0, 1, 0], [], []>} : vector<32x3xf32>, vector<32x3xf32>, vector<32x32xf32> -> vector<32x32xf32>
    %8 = arith.mulf %6, %6 : vector<32x3xf32>
    %cst_4 = arith.constant dense<0.000000e+00> : vector<32xf32>
    %9 = vector.multi_reduction <add>, %8, %cst_4 [1] : vector<32x3xf32> to vector<32xf32>
    %10 = vector.shape_cast %9 : vector<32xf32> to vector<32x1xf32>
    %11 = arith.mulf %3, %3 : vector<32x3xf32>
    %cst_5 = arith.constant dense<0.000000e+00> : vector<32xf32>
    %12 = vector.multi_reduction <add>, %11, %cst_5 [1] : vector<32x3xf32> to vector<32xf32>
    %13 = vector.shape_cast %12 : vector<32xf32> to vector<1x32xf32>
    %14 = vector.broadcast %10 : vector<32x1xf32> to vector<32x32xf32>
    %15 = vector.broadcast %13 : vector<1x32xf32> to vector<32x32xf32>
    %16 = arith.addf %14, %15 : vector<32x32xf32>
    %cst_6 = arith.constant 2.000000e+00 : f32
    %17 = vector.broadcast %cst_6 : f32 to vector<32x32xf32>
    %18 = arith.mulf %17, %7 : vector<32x32xf32>
    %19 = arith.subf %16, %18 : vector<32x32xf32>
    %cst_7 = arith.constant 0.000000e+00 : f32
    %20 = vector.broadcast %cst_7 : f32 to vector<32x32xf32>
    %21 = arith.maximumf %19, %20 : vector<32x32xf32>
    %cst_8 = arith.constant -2.000000e+00 : f32
    %22 = vector.broadcast %cst_8 : f32 to vector<32x32xf32>
    %23 = arith.mulf %21, %22 : vector<32x32xf32>
    %24 = math.exp %23 : vector<32x32xf32>
    %cst_9 = arith.constant dense<0.000000e+00> : vector<32xf32>
    %25 = vector.multi_reduction <add>, %24, %cst_9 [1] : vector<32x32xf32> to vector<32xf32>
    %26 = vector.shape_cast %25 : vector<32xf32> to vector<32x1xf32>
    %cst_10 = arith.constant 2.500000e-02 : f32
    %27 = vector.broadcast %cst_10 : f32 to vector<32x1xf32>
    %28 = arith.mulf %26, %27 : vector<32x1xf32>
    %c0_11 = arith.constant 0 : index
    %c0_12 = arith.constant 0 : index
    %29 = vector.load %arg3[%c0_11, %c0_12] : memref<1x8xf32, #tpu.memory_space<vmem>>, vector<1x8xf32>
    %30 = vector.broadcast %28 : vector<32x1xf32> to vector<32x8xf32>
    %31 = vector.broadcast %29 : vector<1x8xf32> to vector<32x8xf32>
    %32 = arith.mulf %30, %31 : vector<32x8xf32>
    %c0_13 = arith.constant 0 : index
    %c0_14 = arith.constant 0 : index
    %33 = vector.load %arg4[%c0_13, %c0_14] : memref<1x8xf32, #tpu.memory_space<vmem>>, vector<1x8xf32>
    %34 = vector.broadcast %33 : vector<1x8xf32> to vector<32x8xf32>
    %35 = arith.addf %32, %34 : vector<32x8xf32>
    %cst_15 = arith.constant 0.000000e+00 : f32
    %36 = vector.broadcast %cst_15 : f32 to vector<32x8xf32>
    %37 = arith.maximumf %35, %36 : vector<32x8xf32>
    %c0_16 = arith.constant 0 : index
    %c0_17 = arith.constant 0 : index
    %38 = vector.load %arg5[%c0_16, %c0_17] : memref<8x8xf32, #tpu.memory_space<vmem>>, vector<8x8xf32>
    %cst_18 = arith.constant dense<0.000000e+00> : vector<32x8xf32>
    %39 = tpu.matmul %37, %38, %cst_18 {dimension_numbers = #tpu.dot_dimension_numbers<[1], [0], [0], [1], [0, 0, 1, 1], [], []>} : vector<32x8xf32>, vector<8x8xf32>, vector<32x8xf32> -> vector<32x8xf32>
    %c0_19 = arith.constant 0 : index
    %c0_20 = arith.constant 0 : index
    %40 = vector.load %arg6[%c0_19, %c0_20] : memref<1x8xf32, #tpu.memory_space<vmem>>, vector<1x8xf32>
    %41 = vector.broadcast %40 : vector<1x8xf32> to vector<32x8xf32>
    %42 = arith.addf %39, %41 : vector<32x8xf32>
    %cst_21 = arith.constant 0.000000e+00 : f32
    %43 = vector.broadcast %cst_21 : f32 to vector<32x8xf32>
    %44 = arith.maximumf %42, %43 : vector<32x8xf32>
    %c0_22 = arith.constant 0 : index
    %c0_23 = arith.constant 0 : index
    %45 = vector.load %arg7[%c0_22, %c0_23] : memref<8x1xf32, #tpu.memory_space<vmem>>, vector<8x1xf32>
    %cst_24 = arith.constant dense<0.000000e+00> : vector<32x1xf32>
    %46 = tpu.matmul %44, %45, %cst_24 {dimension_numbers = #tpu.dot_dimension_numbers<[1], [0], [0], [1], [0, 0, 1, 1], [], []>} : vector<32x8xf32>, vector<8x1xf32>, vector<32x1xf32> -> vector<32x1xf32>
    %c0_25 = arith.constant 0 : index
    %c0_26 = arith.constant 0 : index
    %47 = vector.load %arg8[%c0_25, %c0_26] : memref<1x1xf32, #tpu.memory_space<vmem>>, vector<1x1xf32>
    %48 = vector.broadcast %47 : vector<1x1xf32> to vector<32x1xf32>
    %49 = arith.addf %46, %48 : vector<32x1xf32>
    %cst_27 = arith.constant 0.000000e+00 : f32
    %50 = vector.broadcast %cst_27 : f32 to vector<32x1xf32>
    %51 = arith.maximumf %49, %50 : vector<32x1xf32>
    %c0_28 = arith.constant 0 : index
    %c0_29 = arith.constant 0 : index
    %c0_30 = arith.constant 0 : index
    %52 = vector.load %arg9[%c0_28, %c0_29, %c0_30] : memref<1x32x1xf32, #tpu.memory_space<vmem>>, vector<1x32x1xf32>
    %53 = vector.shape_cast %52 : vector<1x32x1xf32> to vector<32x1xf32>
    %54 = vector.shape_cast %51 : vector<32x1xf32> to vector<1x32x1xf32>
    tpu.vector_store %arg9[%c0_28, %c0_29, %c0_30], %54 {strides = array<i32>} : memref<1x32x1xf32, #tpu.memory_space<vmem>>, vector<1x32x1xf32>,
    return
  }
  func.func @transform_0(%arg0: i32, %arg1: i32) -> (i32, i32, i32) {
    %c0_i32 = arith.constant 0 : i32
    %c0_i32_0 = arith.constant 0 : i32
    %c0_i32_1 = arith.constant 0 : i32
    return %arg0, %c0_i32, %c0_i32_0 : i32, i32, i32
  }
  func.func @transform_1(%arg0: i32, %arg1: i32) -> (i32, i32) {
    %c0_i32 = arith.constant 0 : i32
    %c0_i32_0 = arith.constant 0 : i32
    %c0_i32_1 = arith.constant 0 : i32
    return %c0_i32, %c0_i32_0 : i32, i32
  }
  func.func @transform_2(%arg0: i32, %arg1: i32) -> (i32, i32) {
    %c0_i32 = arith.constant 0 : i32
    %c0_i32_0 = arith.constant 0 : i32
    %c0_i32_1 = arith.constant 0 : i32
    return %c0_i32, %c0_i32_0 : i32, i32
  }
  func.func @transform_3(%arg0: i32, %arg1: i32) -> (i32, i32) {
    %c0_i32 = arith.constant 0 : i32
    %c0_i32_0 = arith.constant 0 : i32
    %c0_i32_1 = arith.constant 0 : i32
    return %c0_i32, %c0_i32_0 : i32, i32
  }
  func.func @transform_4(%arg0: i32, %arg1: i32) -> (i32, i32) {
    %c0_i32 = arith.constant 0 : i32
    %c0_i32_0 = arith.constant 0 : i32
    %c0_i32_1 = arith.constant 0 : i32
    return %c0_i32, %c0_i32_0 : i32, i32
  }
  func.func @transform_5(%arg0: i32, %arg1: i32) -> (i32, i32) {
    %c0_i32 = arith.constant 0 : i32
    %c0_i32_0 = arith.constant 0 : i32
    %c0_i32_1 = arith.constant 0 : i32
    return %c0_i32, %c0_i32_0 : i32, i32
  }
  func.func @transform_6(%arg0: i32, %arg1: i32) -> (i32, i32) {
    %c0_i32 = arith.constant 0 : i32
    %c0_i32_0 = arith.constant 0 : i32
    %c0_i32_1 = arith.constant 0 : i32
    return %c0_i32, %c0_i32_0 : i32, i32
  }
  func.func @transform_7(%arg0: i32, %arg1: i32) -> (i32, i32, i32) {
    %c0_i32 = arith.constant 0 : i32
    %c0_i32_0 = arith.constant 0 : i32
    return %arg0, %arg1, %c0_i32 : i32, i32, i32
  }
}

</mosaic_0001>

<llo_original>
// kernel: tpu_custom_call.1
$region0: #{tpu_custom_call.1}
  #allocation0 [shape = 'u32[]', space=smem, size = 0x4, offset = 0x4, fixed_abs, tag = 'smem constant byte address 0x4 - core index']
  #allocation1 [shape = 'u32[144,128]{1,0:T(1,128)}', space=vmem, size = 0x12000, scoped, tag = 'internal scratch']
  #allocation2 [shape = 'f32[1,1]{1,0:T(1,128)S(1)}', space=vmem, size = 0x200, scoped, tag = 'scoped memory for tpu_custom_call.1']
  %s0 = inlined_call_operand.vmem [shape: f32[2,32,3], index: 0, kind: input, shape index: {}]
  %s1 = inlined_call_operand.vmem [shape: f32[1,8], index: 1, kind: input, shape index: {}]
  %s2 = inlined_call_operand.vmem [shape: f32[1,8], index: 2, kind: input, shape index: {}]
  %s3 = inlined_call_operand.vmem [shape: f32[8,8], index: 3, kind: input, shape index: {}]
  %s4 = inlined_call_operand.vmem [shape: f32[1,8], index: 4, kind: input, shape index: {}]
  %s5 = inlined_call_operand.vmem [shape: f32[8,1], index: 5, kind: input, shape index: {}]
  %s6 = inlined_call_operand.<no memory space> [shape: f32[1,1], index: 6, kind: input, shape index: {}]
  %s7 = inlined_call_operand.vmem [shape: f32[2,32,1], index: 7, kind: output, shape index: {}]
  %s8 = sld [smem:[#allocation0]]
  $region61: #{tpu_custom_call.1} parent=0
    _
  %s10 = ssub.s32 1, %s8
  %s11 = scalar_select 0, %s10, %s8
  %v12 = vstv %s6
  %13 = vst [vmem:[#allocation2] sm:$0x1] %v12
  loop: start=0, step=1, limit=4
  $region2: #{tpu_custom_call.1} parent=0 // loop_pre_header
    _
  $region3: #{tpu_custom_call.1} parent=0 // loop_header
    %s15 = sphi 0, %s19
    %p16 = scmp.ge.s32.totalorder %s15, 4
    %s22 = sphi 0, %s34
    %s23 = sphi 0, %s30
    %s24 = sphi 0, %s22
    %s25 = sphi 0, %s23
    %s26 = sphi 0, %s24
    %s27 = sphi 0, %s25
    %s37 = sphi 0, %s39
    %s40 = sphi 0, %s37
    %s41 = sphi 0, %s40
    %s57 = sphi 0, %s41
    %s61 = sphi 0, %s61
    %s63 = sphi 0, %s61
    %s64 = sphi 0, %s63
    %s78 = sphi 0, %s64
    %s82 = sphi 0, %s82
    %s84 = sphi 0, %s82
    %s85 = sphi 0, %s84
    %s99 = sphi 0, %s85
    %s103 = sphi 0, %s103
    %s105 = sphi 0, %s103
    %s106 = sphi 0, %s105
    %s120 = sphi 0, %s106
    %s124 = sphi 0, %s124
    %s126 = sphi 0, %s124
    %s127 = sphi 0, %s126
    %s141 = sphi 0, %s127
    %s145 = sphi 0, %s145
    %s147 = sphi 0, %s145
    %s148 = sphi 0, %s147
    %s162 = sphi 0, %s148
    %s166 = sphi 0, %s166
    %s168 = sphi 0, %s166
    %s169 = sphi 0, %s168
    %s183 = sphi 0, %s169
    %s191 = sphi 0, %s193
    %s194 = sphi 0, %s191
    %s195 = sphi 0, %s194
    %s211 = sphi 0, %s195
  $region4: #{tpu_custom_call.1} parent=0 // loop_header_branch
    %18 = sbr.rel (%p16) target = $region8
  $region5: #{tpu_custom_call.1} parent=0 // loop_body
    %s20 = ssub.s32 %s15, 1
    %s21 = ssub.s32 %s15, 2
    %s28 = sadd.s32 1, %s23
    %p29 = scmp.ge.s32.totalorder %s28, 1
    %s30 = scalar_select %p29, 0, %s28
    %s31 = sadd.s32 1, %s22
    %s32 = scalar_select %p29, %s31, %s22
    %p33 = scmp.ge.s32.totalorder %s32, 2
    %s34 = scalar_select %p33, 0, %s32
    %s35 = ssub.s32 %s22, %s34
    %p36 = scmp.eq.s32.totalorder %s35, 0
    %s38 = sadd.s32 %s37, 1
    %s39 = scalar_select %p36, %s37, %s38
    %p42 = pneg %p36
    %p43 = scmp.eq.s32.totalorder %s15, 1
    %p44 = por %p42, %p43
    %p45 = scmp.ne.s32.totalorder %s37, %s40
    %p46 = scmp.eq.s32.totalorder %s15, 0
    %p47 = por %p45, %p46
    %p48 = scmp.ne.s32.totalorder %s37, %s40
    %p49 = scmp.eq.s32.totalorder %s20, 1
    %p50 = por %p48, %p49
    %p51 = scmp.ne.s32.totalorder %s40, %s41
    %p52 = scmp.eq.s32.totalorder %s20, 0
    %p53 = por %p51, %p52
    %p54 = scmp.ne.s32.totalorder %s40, %s41
    %p55 = scmp.eq.s32.totalorder %s21, 1
    %p56 = por %p54, %p55
    %p58 = scmp.ne.s32.totalorder %s41, %s57
    %p59 = scmp.eq.s32.totalorder %s21, 0
    %p60 = por %p58, %p59
    %s62 = sadd.s32 %s61, 1
    %p65 = scmp.eq.s32.totalorder %s15, 1
    %p66 = scmp.ne.s32.totalorder %s61, %s63
    %p67 = scmp.eq.s32.totalorder %s15, 0
    %p68 = por %p66, %p67
    %p69 = scmp.ne.s32.totalorder %s61, %s63
    %p70 = scmp.eq.s32.totalorder %s20, 1
    %p71 = por %p69, %p70
    %p72 = scmp.ne.s32.totalorder %s63, %s64
    %p73 = scmp.eq.s32.totalorder %s20, 0
    %p74 = por %p72, %p73
    %p75 = scmp.ne.s32.totalorder %s63, %s64
    %p76 = scmp.eq.s32.totalorder %s21, 1
    %p77 = por %p75, %p76
    %p79 = scmp.ne.s32.totalorder %s64, %s78
    %p80 = scmp.eq.s32.totalorder %s21, 0
    %p81 = por %p79, %p80
    %s83 = sadd.s32 %s82, 1
    %p86 = scmp.eq.s32.totalorder %s15, 1
    %p87 = scmp.ne.s32.totalorder %s82, %s84
    %p88 = scmp.eq.s32.totalorder %s15, 0
    %p89 = por %p87, %p88
    %p90 = scmp.ne.s32.totalorder %s82, %s84
    %p91 = scmp.eq.s32.totalorder %s20, 1
    %p92 = por %p90, %p91
    %p93 = scmp.ne.s32.totalorder %s84, %s85
    %p94 = scmp.eq.s32.totalorder %s20, 0
    %p95 = por %p93, %p94
    %p96 = scmp.ne.s32.totalorder %s84, %s85
    %p97 = scmp.eq.s32.totalorder %s21, 1
    %p98 = por %p96, %p97
    %p100 = scmp.ne.s32.totalorder %s85, %s99
    %p101 = scmp.eq.s32.totalorder %s21, 0
    %p102 = por %p100, %p101
    %s104 = sadd.s32 %s103, 1
    %p107 = scmp.eq.s32.totalorder %s15, 1
    %p108 = scmp.ne.s32.totalorder %s103, %s105
    %p109 = scmp.eq.s32.totalorder %s15, 0
    %p110 = por %p108, %p109
    %p111 = scmp.ne.s32.totalorder %s103, %s105
    %p112 = scmp.eq.s32.totalorder %s20, 1
    %p113 = por %p111, %p112
    %p114 = scmp.ne.s32.totalorder %s105, %s106
    %p115 = scmp.eq.s32.totalorder %s20, 0
    %p116 = por %p114, %p115
    %p117 = scmp.ne.s32.totalorder %s105, %s106
    %p118 = scmp.eq.s32.totalorder %s21, 1
    %p119 = por %p117, %p118
    %p121 = scmp.ne.s32.totalorder %s106, %s120
    %p122 = scmp.eq.s32.totalorder %s21, 0
    %p123 = por %p121, %p122
    %s125 = sadd.s32 %s124, 1
    %p128 = scmp.eq.s32.totalorder %s15, 1
    %p129 = scmp.ne.s32.totalorder %s124, %s126
    %p130 = scmp.eq.s32.totalorder %s15, 0
    %p131 = por %p129, %p130
    %p132 = scmp.ne.s32.totalorder %s124, %s126
    %p133 = scmp.eq.s32.totalorder %s20, 1
    %p134 = por %p132, %p133
    %p135 = scmp.ne.s32.totalorder %s126, %s127
    %p136 = scmp.eq.s32.totalorder %s20, 0
    %p137 = por %p135, %p136
    %p138 = scmp.ne.s32.totalorder %s126, %s127
    %p139 = scmp.eq.s32.totalorder %s21, 1
    %p140 = por %p138, %p139
    %p142 = scmp.ne.s32.totalorder %s127, %s141
    %p143 = scmp.eq.s32.totalorder %s21, 0
    %p144 = por %p142, %p143
    %s146 = sadd.s32 %s145, 1
    %p149 = scmp.eq.s32.totalorder %s15, 1
    %p150 = scmp.ne.s32.totalorder %s145, %s147
    %p151 = scmp.eq.s32.totalorder %s15, 0
    %p152 = por %p150, %p151
    %p153 = scmp.ne.s32.totalorder %s145, %s147
    %p154 = scmp.eq.s32.totalorder %s20, 1
    %p155 = por %p153, %p154
    %p156 = scmp.ne.s32.totalorder %s147, %s148
    %p157 = scmp.eq.s32.totalorder %s20, 0
    %p158 = por %p156, %p157
    %p159 = scmp.ne.s32.totalorder %s147, %s148
    %p160 = scmp.eq.s32.totalorder %s21, 1
    %p161 = por %p159, %p160
    %p163 = scmp.ne.s32.totalorder %s148, %s162
    %p164 = scmp.eq.s32.totalorder %s21, 0
    %p165 = por %p163, %p164
    %s167 = sadd.s32 %s166, 1
    %p170 = scmp.eq.s32.totalorder %s15, 1
    %p171 = scmp.ne.s32.totalorder %s166, %s168
    %p172 = scmp.eq.s32.totalorder %s15, 0
    %p173 = por %p171, %p172
    %p174 = scmp.ne.s32.totalorder %s166, %s168
    %p175 = scmp.eq.s32.totalorder %s20, 1
    %p176 = por %p174, %p175
    %p177 = scmp.ne.s32.totalorder %s168, %s169
    %p178 = scmp.eq.s32.totalorder %s20, 0
    %p179 = por %p177, %p178
    %p180 = scmp.ne.s32.totalorder %s168, %s169
    %p181 = scmp.eq.s32.totalorder %s21, 1
    %p182 = por %p180, %p181
    %p184 = scmp.ne.s32.totalorder %s169, %s183
    %p185 = scmp.eq.s32.totalorder %s21, 0
    %p186 = por %p184, %p185
    %s187 = ssub.s32 %s22, %s34
    %s188 = ssub.s32 %s23, %s30
    %s189 = sor.u32 %s187, %s188
    %p190 = scmp.eq.s32.totalorder %s189, 0
    %s192 = sadd.s32 %s191, 1
    %s193 = scalar_select %p190, %s191, %s192
    %p196 = pneg %p190
    %p197 = scmp.eq.s32.totalorder %s15, 1
    %p198 = por %p196, %p197
    %p199 = scmp.ne.s32.totalorder %s191, %s194
    %p200 = scmp.eq.s32.totalorder %s15, 0
    %p201 = por %p199, %p200
    %p202 = scmp.ne.s32.totalorder %s191, %s194
    %p203 = scmp.eq.s32.totalorder %s20, 1
    %p204 = por %p202, %p203
    %p205 = scmp.ne.s32.totalorder %s194, %s195
    %p206 = scmp.eq.s32.totalorder %s20, 0
    %p207 = por %p205, %p206
    %p208 = scmp.ne.s32.totalorder %s194, %s195
    %p209 = scmp.eq.s32.totalorder %s21, 1
    %p210 = por %p208, %p209
    %p212 = scmp.ne.s32.totalorder %s195, %s211
    %p213 = scmp.eq.s32.totalorder %s21, 0
    %p214 = por %p212, %p213
    %p215 = scmp.le.s32.totalorder 1, %s15
    %p216 = scmp.lt.s32.totalorder %s15, 3
    %p217 = pnand %p215, %p216
    %p218 = pneg %p217
    // Predicated region
    $region9: #{tpu_custom_call.1} parent=5 // pred_check
      _
    $region10: #{tpu_custom_call.1} parent=5 // pred_check_branch
      %220 = sbr.rel (%p217) target = $region12
    $region11: #{tpu_custom_call.1} parent=5 // pred_region
      %s221 = ssub.s32 %s15, 1
      // Predicated region
      $region13: #{tpu_custom_call.1} parent=11 // pred_check
        %p222 = pneg %p74
      $region14: #{tpu_custom_call.1} parent=11 // pred_check_branch
        %224 = sbr.rel (%p222) target = $region16
      $region15: #{tpu_custom_call.1} parent=11 // pred_region
        _
      $region16: #{tpu_custom_call.1} parent=11 // pred_fallthru
        _
      // Predicated region
      $region17: #{tpu_custom_call.1} parent=11 // pred_check
        %p225 = pneg %p95
      $region18: #{tpu_custom_call.1} parent=11 // pred_check_branch
        %227 = sbr.rel (%p225) target = $region20
      $region19: #{tpu_custom_call.1} parent=11 // pred_region
        _
      $region20: #{tpu_custom_call.1} parent=11 // pred_fallthru
        _
      // Predicated region
      $region21: #{tpu_custom_call.1} parent=11 // pred_check
        %p228 = pneg %p116
      $region22: #{tpu_custom_call.1} parent=11 // pred_check_branch
        %230 = sbr.rel (%p228) target = $region24
      $region23: #{tpu_custom_call.1} parent=11 // pred_region
        _
      $region24: #{tpu_custom_call.1} parent=11 // pred_fallthru
        _
      // Predicated region
      $region25: #{tpu_custom_call.1} parent=11 // pred_check
        %p231 = pneg %p137
      $region26: #{tpu_custom_call.1} parent=11 // pred_check_branch
        %233 = sbr.rel (%p231) target = $region28
      $region27: #{tpu_custom_call.1} parent=11 // pred_region
        _
      $region28: #{tpu_custom_call.1} parent=11 // pred_fallthru
        _
      // Predicated region
      $region29: #{tpu_custom_call.1} parent=11 // pred_check
        %p234 = pneg %p158
      $region30: #{tpu_custom_call.1} parent=11 // pred_check_branch
        %236 = sbr.rel (%p234) target = $region32
      $region31: #{tpu_custom_call.1} parent=11 // pred_region
        _
      $region32: #{tpu_custom_call.1} parent=11 // pred_fallthru
        _
      // Predicated region
      $region33: #{tpu_custom_call.1} parent=11 // pred_check
        %p237 = pneg %p179
      $region34: #{tpu_custom_call.1} parent=11 // pred_check_branch
        %239 = sbr.rel (%p237) target = $region36
      $region35: #{tpu_custom_call.1} parent=11 // pred_region
        _
      $region36: #{tpu_custom_call.1} parent=11 // pred_fallthru
        _
    $region12: #{tpu_custom_call.1} parent=5 // pred_fallthru
      _
    %p240 = scmp.lt.s32.totalorder %s15, 2
    // Predicated region
    $region37: #{tpu_custom_call.1} parent=5 // pred_check
      %p241 = pneg %p240
    $region38: #{tpu_custom_call.1} parent=5 // pred_check_branch
      %243 = sbr.rel (%p241) target = $region40
    $region39: #{tpu_custom_call.1} parent=5 // pred_region
      // Predicated region
      $region41: #{tpu_custom_call.1} parent=39 // pred_check
        %p244 = pneg %p47
      $region42: #{tpu_custom_call.1} parent=39 // pred_check_branch
        %246 = sbr.rel (%p244) target = $region44
      $region43: #{tpu_custom_call.1} parent=39 // pred_region
        %p247 = scmp.lt.s32.totalorder %s22, 1
        %s248 = scalar_select %p247, %s22, 1
        %s249 = smul.addr %s248, 4
        %s250 = smul.addr %s249, 8
        %s251 = scalar_lea.vmem %s0, %s250
      $region44: #{tpu_custom_call.1} parent=39 // pred_fallthru
        _
    $region40: #{tpu_custom_call.1} parent=5 // pred_fallthru
      _
    %p252 = scmp.le.s32.totalorder 1, %s15
    %p253 = scmp.lt.s32.totalorder %s15, 3
    %p254 = pnand %p252, %p253
    %p255 = pneg %p254
    // Predicated region
    $region45: #{tpu_custom_call.1} parent=5 // pred_check
      _
    $region46: #{tpu_custom_call.1} parent=5 // pred_check_branch
      %257 = sbr.rel (%p254) target = $region48
    $region47: #{tpu_custom_call.1} parent=5 // pred_region
      %s258 = ssub.s32 %s15, 1
      %p259 = scmp.lt.s32.totalorder %s24, 1
      %s260 = scalar_select %p259, %s24, 1
      %s261 = smul.addr %s260, 4
      %s262 = smul.addr %s261, 8
      %s263 = scalar_lea.vmem %s0, %s262
      %p264 = pneg %p53
      %p265 = pneg %p50
      %p266 = pneg %p74
      %p267 = pneg %p71
      %p268 = pneg %p95
      %p269 = pneg %p92
      %p270 = pneg %p116
      %p271 = pneg %p113
      %p272 = pneg %p137
      %p273 = pneg %p134
      %p274 = pneg %p158
      %p275 = pneg %p155
      %p276 = pneg %p179
      %p277 = pneg %p176
      %p278 = pneg %p207
      %p279 = pneg %p204
      %s280 = smul.u32 4, %s25
      %p281 = scmp.lt.s32.totalorder %s24, 1
      %s282 = scalar_select %p281, %s24, 1
      %p283 = scmp.lt.s32.totalorder %s280, 3
      %s284 = scalar_select %p283, %s280, 3
      %s285 = smul.addr %s282, 4
      %s286 = sadd.s32 %s284, %s285
      %s287 = smul.addr %s286, 8
      %s288 = scalar_lea.vmem %s7, %s287
      %p289 = scmp.lt.s32.totalorder %s24, 1
      %s290 = scalar_select %p289, %s24, 1
      %s291 = smul.addr %s290, 4
      %s292 = smul.addr %s291, 8
      %s293 = scalar_lea.vmem %s0, %s292
      %s294 = smul.u32 4, %s25
      %p295 = scmp.lt.s32.totalorder %s24, 1
      %s296 = scalar_select %p295, %s24, 1
      %p297 = scmp.lt.s32.totalorder %s294, 3
      %s298 = scalar_select %p297, %s294, 3
      %s299 = smul.addr %s296, 4
      %s300 = sadd.s32 %s298, %s299
      %s301 = smul.addr %s300, 8
      %s302 = scalar_lea.vmem %s7, %s301
      %s303 = smul.u32 4, %s25
      %s304 = smul.u32 %s25, 32
      %v305 = vld [vmem:[%s293] sm:$0xff]
      %v306 = vld [vmem:[%s293 + $0x8] sm:$0xff]
      %v307 = vld [vmem:[%s293 + $0x10] sm:$0xff]
      %v308 = vld [vmem:[%s293 + $0x18] sm:$0xff]
      %s309 = scalar_lea.vmem %s293, %s304
      %v310 = vld [vmem:[%s309] sm:$0xff]
      %v311 = vld [vmem:[%s309 + $0x8] sm:$0xff]
      %v312 = vld [vmem:[%s309 + $0x10] sm:$0xff]
      %v313 = vld [vmem:[%s309 + $0x18] sm:$0xff]
      %vm314 = vcmask 23552
      %v316 = vsel %vm314, %v310, 0
      %v319 = vsel %vm314, %v311, 0
      %v322 = vsel %vm314, %v312, 0
      %v325 = vsel %vm314, %v313, 0
      %v328 = vsel %vm314, %v305, 0
      %v331 = vsel %vm314, %v306, 0
      %v334 = vsel %vm314, %v307, 0
      %v337 = vsel %vm314, %v308, 0
      %339 = vmatprep.subr.mxu0 0.0
      %340 = vmatpush1.xpose.msra.mxu0 %v328
      %341 = vmatprep.subr.mxu0 0.0
      %342 = vmatpush1.xpose.msra.mxu0 %v331
      %343 = vmatprep.subr.mxu0 0.0
      %344 = vmatpush1.xpose.msra.mxu0 %v334
      %345 = vmatprep.subr.mxu0 0.0
      %346 = vmatpush1.xpose.msra.mxu0 %v337
      %347 = vmatprep.subr.mxu0 0.0
      %348 = vmatpush1.xpose.msra.mxu0 0.0
      %349 = vmatprep.subr.mxu0 0.0
      %350 = vmatpush1.xpose.msra.mxu0 0.0
      %351 = vmatprep.subr.mxu0 0.0
      %352 = vmatpush1.xpose.msra.mxu0 0.0
      %353 = vmatprep.subr.mxu0 0.0
      %354 = vmatpush1.xpose.msra.mxu0 0.0
      %355 = vmatprep.subr.mxu0 0.0
      %356 = vmatpush1.xpose.msra.mxu0 0.0
      %357 = vmatprep.subr.mxu0 0.0
      %358 = vmatpush1.xpose.msra.mxu0 0.0
      %359 = vmatprep.subr.mxu0 0.0
      %360 = vmatpush1.xpose.msra.mxu0 0.0
      %361 = vmatprep.subr.mxu0 0.0
      %362 = vmatpush1.xpose.msra.mxu0 0.0
      %363 = vmatprep.subr.mxu0 0.0
      %364 = vmatpush1.xpose.msra.mxu0 0.0
      %365 = vmatprep.subr.mxu0 0.0
      %366 = vmatpush1.xpose.msra.mxu0 0.0
      %367 = vmatprep.subr.mxu0 0.0
      %368 = vmatpush1.xpose.msra.mxu0 0.0
      %369 = vmatprep.subr.mxu0 0.0
      %370 = vmatpush1.xpose.msra.mxu0 0.0
      %371 = vmatprep.subr.mxu0 0.0
      %372 = vmatpush1.xpose.msra.mxu0 0.0
      %373 = vmatprep.subr.mxu0 0.0
      %374 = vmatpush1.xpose.msra.mxu0 0.0
      %375 = vmatprep.subr.mxu0 0.0
      %376 = vmatpush1.xpose.msra.mxu0 0.0
      %377 = vmatprep.subr.mxu0 0.0
      %378 = vmatpush1.xpose.msra.mxu0 0.0
      %379 = vmatprep.subr.mxu0 0.0
      %380 = vmatpush1.xpose.msra.mxu0 0.0
      %381 = vmatprep.subr.mxu0 0.0
      %382 = vmatpush1.xpose.msra.mxu0 0.0
      %383 = vmatprep.subr.mxu0 0.0
      %384 = vmatpush1.xpose.msra.mxu0 0.0
      %385 = vmatprep.subr.mxu0 0.0
      %386 = vmatpush1.xpose.msra.mxu0 0.0
      %387 = vmatprep.subr.mxu0 0.0
      %388 = vmatpush1.xpose.msra.mxu0 0.0
      %389 = vmatprep.subr.mxu0 0.0
      %390 = vmatpush1.xpose.msra.mxu0 0.0
      %391 = vmatprep.subr.mxu0 0.0
      %392 = vmatpush1.xpose.msra.mxu0 0.0
      %393 = vmatprep.subr.mxu0 0.0
      %394 = vmatpush1.xpose.msra.mxu0 0.0
      %395 = vmatprep.subr.mxu0 0.0
      %396 = vmatpush1.xpose.msra.mxu0 0.0
      %397 = vmatprep.subr.mxu0 0.0
      %398 = vmatpush1.xpose.msra.mxu0 0.0
      %399 = vmatprep.subr.mxu0 0.0
      %400 = vmatpush1.xpose.msra.mxu0 0.0
      %401 = vmatprep.subr.mxu0 0.0
      %402 = vmatpush1.xpose.msra.mxu0 0.0
      %403 = vmatprep.mubr.f32.mxu0 0.0
      %404 = vmatmul.mubr.f32.gmra.mrb[0].mxu0 %v316
      %v405 = vpop.f32.mrb[0].mxu0
      %v406 = vadd.f32 0.0, %v405
      %v407 = vpop.f32.mrb[0].mxu0
      %408 = vmatprep.mubr.f32.mxu0 0.0
      %409 = vmatmul.mubr.f32.gmra.mrb[0].mxu0 %v319
      %v410 = vpop.f32.mrb[0].mxu0
      %v411 = vadd.f32 0.0, %v410
      %v412 = vpop.f32.mrb[0].mxu0
      %413 = vmatprep.mubr.f32.mxu0 0.0
      %414 = vmatmul.mubr.f32.gmra.mrb[0].mxu0 %v322
      %v415 = vpop.f32.mrb[0].mxu0
      %v416 = vadd.f32 0.0, %v415
      %v417 = vpop.f32.mrb[0].mxu0
      %418 = vmatprep.mubr.f32.mxu0 0.0
      %419 = vmatmul.mubr.f32.gmra.mrb[0].mxu0 %v325
      %v420 = vpop.f32.mrb[0].mxu0
      %v421 = vadd.f32 0.0, %v420
      %v422 = vpop.f32.mrb[0].mxu0
      %423 = vdwg.mxu0
      %v424 = vmul.f32 %v310, %v310
      %v425 = vmul.f32 %v311, %v311
      %v426 = vmul.f32 %v312, %v312
      %v427 = vmul.f32 %v313, %v313
      %v428 = vsel %vm314, %v424, 0.0
      %429 = vadd.xlane.f32.xlu0 %v428
      %v430 = vpop.xlane.xlu0 %429
      %v431 = vsel %vm314, %v425, 0.0
      %432 = vadd.xlane.f32.xlu0 %v431
      %v433 = vpop.xlane.xlu0 %432
      %v434 = vsel %vm314, %v426, 0.0
      %435 = vadd.xlane.f32.xlu0 %v434
      %v436 = vpop.xlane.xlu0 %435
      %v437 = vsel %vm314, %v427, 0.0
      %438 = vadd.xlane.f32.xlu0 %v437
      %v439 = vpop.xlane.xlu0 %438
      %v440 = vmul.f32 %v305, %v305
      %v441 = vmul.f32 %v306, %v306
      %v442 = vmul.f32 %v307, %v307
      %v443 = vmul.f32 %v308, %v308
      %v444 = vsel %vm314, %v440, 0.0
      %445 = vadd.xlane.f32.xlu0 %v444
      %v446 = vpop.xlane.xlu0 %445
      %v447 = vsel %vm314, %v441, 0.0
      %448 = vadd.xlane.f32.xlu0 %v447
      %v449 = vpop.xlane.xlu0 %448
      %v450 = vsel %vm314, %v442, 0.0
      %451 = vadd.xlane.f32.xlu0 %v450
      %v452 = vpop.xlane.xlu0 %451
      %v453 = vsel %vm314, %v443, 0.0
      %454 = vadd.xlane.f32.xlu0 %v453
      %v455 = vpop.xlane.xlu0 %454
      %v460 = vlaneseq
      %v461 = vand.u32 %v460, 127
      %v462 = vlaneseq
      %v463 = vshrl.u32 %v462, 7
      %v464 = vsub.s32 %v461, %v463
      %v465 = vrot.slane %v446, %v464
      %v466 = vadd.s32 %v461, 4294967288
      %v467 = vlaneseq
      %v468 = vshrl.u32 %v467, 7
      %v469 = vsub.s32 %v466, %v468
      %v470 = vrot.slane %v449, %v469
      %vm471 = vcmask 130112
      %v472 = vsel %vm471, %v470, %v465
      %v473 = vadd.s32 %v461, 4294967280
      %v474 = vlaneseq
      %v475 = vshrl.u32 %v474, 7
      %v476 = vsub.s32 %v473, %v475
      %v477 = vrot.slane %v452, %v476
      %vm478 = vcmask 195712
      %v479 = vsel %vm478, %v477, %v472
      %v480 = vadd.s32 %v461, 4294967272
      %v481 = vlaneseq
      %v482 = vshrl.u32 %v481, 7
      %v483 = vsub.s32 %v480, %v482
      %v484 = vrot.slane %v455, %v483
      %vm485 = vcmask 261312
      %v486 = vsel %vm485, %v484, %v479
      %vm487 = vcmask 1042434
      %v488 = vsel %vm487, %v486, %v486
      %vm489 = vcmask 1043459
      %v490 = vsel %vm489, %v486, %v488
      %vm491 = vcmask 1044484
      %v492 = vsel %vm491, %v486, %v490
      %vm493 = vcmask 1045509
      %v494 = vsel %vm493, %v486, %v492
      %vm495 = vcmask 1046534
      %v496 = vsel %vm495, %v486, %v494
      %vm497 = vcmask 1047559
      %v498 = vsel %vm497, %v486, %v496
      %v500 = vadd.f32 %v430, %v498
      %v501 = vadd.f32 %v433, %v498
      %v502 = vadd.f32 %v436, %v498
      %v503 = vadd.f32 %v439, %v498
      %v504 = vmul.f32 %v406, 2.0
      %v505 = vmul.f32 %v411, 2.0
      %v506 = vmul.f32 %v416, 2.0
      %v507 = vmul.f32 %v421, 2.0
      %v508 = vsub.f32 %v500, %v504
      %v509 = vsub.f32 %v501, %v505
      %v510 = vsub.f32 %v502, %v506
      %v511 = vsub.f32 %v503, %v507
      %v512 = vmax.f32 %v508, 0.0
      %v513 = vmax.f32 %v509, 0.0
      %v514 = vmax.f32 %v510, 0.0
      %v515 = vmax.f32 %v511, 0.0
      %v516 = vmul.f32 %v512, -2.0
      %v517 = vmul.f32 %v513, -2.0
      %v518 = vmul.f32 %v514, -2.0
      %v519 = vmul.f32 %v515, -2.0
      %v520 = vmul.f32 %v516, 1.442695
      %v521 = vpow.pop %v520
      %v522 = vmul.f32 %v517, 1.442695
      %v523 = vpow.pop %v522
      %v524 = vmul.f32 %v518, 1.442695
      %v525 = vpow.pop %v524
      %v526 = vmul.f32 %v519, 1.442695
      %v527 = vpow.pop %v526
      %vm528 = vcmask 261120
      %v529 = vsel %vm528, %v521, 0.0
      %530 = vadd.xlane.f32.xlu0 %v529
      %v531 = vpop.xlane.xlu0 %530
      %v532 = vsel %vm528, %v523, 0.0
      %533 = vadd.xlane.f32.xlu0 %v532
      %v534 = vpop.xlane.xlu0 %533
      %v535 = vsel %vm528, %v525, 0.0
      %536 = vadd.xlane.f32.xlu0 %v535
      %v537 = vpop.xlane.xlu0 %536
      %v538 = vsel %vm528, %v527, 0.0
      %539 = vadd.xlane.f32.xlu0 %v538
      %v540 = vpop.xlane.xlu0 %539
      %v541 = vmul.f32 %v531, 0.025
      %v542 = vmul.f32 %v534, 0.025
      %v543 = vmul.f32 %v537, 0.025
      %v544 = vmul.f32 %v540, 0.025
      %v545 = vld [vmem:[%s1] sm:$0x1]
      %v547 = vlaneseq
      %v548 = vshrl.u32 %v547, 7
      %v549 = vsub.s32 0, %v548
      %v550 = vrot.slane %v545, %v549
      %v552 = vmul.f32 %v541, %v550
      %v553 = vmul.f32 %v542, %v550
      %v554 = vmul.f32 %v543, %v550
      %v555 = vmul.f32 %v544, %v550
      %v556 = vld [vmem:[%s2] sm:$0x1]
      %v558 = vlaneseq
      %v559 = vshrl.u32 %v558, 7
      %v560 = vsub.s32 0, %v559
      %v561 = vrot.slane %v556, %v560
      %v563 = vadd.f32 %v552, %v561
      %v564 = vadd.f32 %v553, %v561
      %v565 = vadd.f32 %v554, %v561
      %v566 = vadd.f32 %v555, %v561
      %v567 = vmax.f32 %v563, 0.0
      %v568 = vmax.f32 %v564, 0.0
      %v569 = vmax.f32 %v565, 0.0
      %v570 = vmax.f32 %v566, 0.0
      %v571 = vld [vmem:[%s3] sm:$0xff]
      %v572 = vld [vmem:[%s4] sm:$0x1]
      %v574 = vlaneseq
      %v575 = vshrl.u32 %v574, 7
      %v576 = vsub.s32 0, %v575
      %v577 = vrot.slane %v572, %v576
      %vm579 = vcmask 64512
      %v581 = vsel %vm579, %v567, 0
      %v584 = vsel %vm579, %v568, 0
      %v587 = vsel %vm579, %v569, 0
      %v590 = vsel %vm579, %v570, 0
      %592 = vmatprep.subr.mxu0 0.0
      %593 = vmatpush1.msra.mxu0 %v571
      %594 = vmatprep.subr.mxu0 0.0
      %595 = vmatpush1.msra.mxu0 0.0
      %596 = vmatprep.subr.mxu0 0.0
      %597 = vmatpush1.msra.mxu0 0.0
      %598 = vmatprep.subr.mxu0 0.0
      %599 = vmatpush1.msra.mxu0 0.0
      %600 = vmatprep.subr.mxu0 0.0
      %601 = vmatpush1.msra.mxu0 0.0
      %602 = vmatprep.subr.mxu0 0.0
      %603 = vmatpush1.msra.mxu0 0.0
      %604 = vmatprep.subr.mxu0 0.0
      %605 = vmatpush1.msra.mxu0 0.0
      %606 = vmatprep.subr.mxu0 0.0
      %607 = vmatpush1.msra.mxu0 0.0
      %608 = vmatprep.subr.mxu0 0.0
      %609 = vmatpush1.msra.mxu0 0.0
      %610 = vmatprep.subr.mxu0 0.0
      %611 = vmatpush1.msra.mxu0 0.0
      %612 = vmatprep.subr.mxu0 0.0
      %613 = vmatpush1.msra.mxu0 0.0
      %614 = vmatprep.subr.mxu0 0.0
      %615 = vmatpush1.msra.mxu0 0.0
      %616 = vmatprep.subr.mxu0 0.0
      %617 = vmatpush1.msra.mxu0 0.0
      %618 = vmatprep.subr.mxu0 0.0
      %619 = vmatpush1.msra.mxu0 0.0
      %620 = vmatprep.subr.mxu0 0.0
      %621 = vmatpush1.msra.mxu0 0.0
      %622 = vmatprep.subr.mxu0 0.0
      %623 = vmatpush1.msra.mxu0 0.0
      %624 = vmatprep.subr.mxu0 0.0
      %625 = vmatpush1.msra.mxu0 0.0
      %626 = vmatprep.subr.mxu0 0.0
      %627 = vmatpush1.msra.mxu0 0.0
      %628 = vmatprep.subr.mxu0 0.0
      %629 = vmatpush1.msra.mxu0 0.0
      %630 = vmatprep.subr.mxu0 0.0
      %631 = vmatpush1.msra.mxu0 0.0
      %632 = vmatprep.subr.mxu0 0.0
      %633 = vmatpush1.msra.mxu0 0.0
      %634 = vmatprep.subr.mxu0 0.0
      %635 = vmatpush1.msra.mxu0 0.0
      %636 = vmatprep.subr.mxu0 0.0
      %637 = vmatpush1.msra.mxu0 0.0
      %638 = vmatprep.subr.mxu0 0.0
      %639 = vmatpush1.msra.mxu0 0.0
      %640 = vmatprep.subr.mxu0 0.0
      %641 = vmatpush1.msra.mxu0 0.0
      %642 = vmatprep.subr.mxu0 0.0
      %643 = vmatpush1.msra.mxu0 0.0
      %644 = vmatprep.subr.mxu0 0.0
      %645 = vmatpush1.msra.mxu0 0.0
      %646 = vmatprep.subr.mxu0 0.0
      %647 = vmatpush1.msra.mxu0 0.0
      %648 = vmatprep.subr.mxu0 0.0
      %649 = vmatpush1.msra.mxu0 0.0
      %650 = vmatprep.subr.mxu0 0.0
      %651 = vmatpush1.msra.mxu0 0.0
      %652 = vmatprep.subr.mxu0 0.0
      %653 = vmatpush1.msra.mxu0 0.0
      %654 = vmatprep.subr.mxu0 0.0
      %655 = vmatpush1.msra.mxu0 0.0
      %656 = vmatprep.mubr.f32.mxu0 0.0
      %657 = vmatmul.mubr.f32.gmra.mrb[0].mxu0 %v581
      %v658 = vpop.f32.mrb[0].mxu0
      %v659 = vadd.f32 %v577, %v658
      %v660 = vpop.f32.mrb[0].mxu0
      %661 = vmatprep.mubr.f32.mxu0 0.0
      %662 = vmatmul.mubr.f32.gmra.mrb[0].mxu0 %v584
      %v663 = vpop.f32.mrb[0].mxu0
      %v664 = vadd.f32 %v577, %v663
      %v665 = vpop.f32.mrb[0].mxu0
      %666 = vmatprep.mubr.f32.mxu0 0.0
      %667 = vmatmul.mubr.f32.gmra.mrb[0].mxu0 %v587
      %v668 = vpop.f32.mrb[0].mxu0
      %v669 = vadd.f32 %v577, %v668
      %v670 = vpop.f32.mrb[0].mxu0
      %671 = vmatprep.mubr.f32.mxu0 0.0
      %672 = vmatmul.mubr.f32.gmra.mrb[0].mxu0 %v590
      %v673 = vpop.f32.mrb[0].mxu0
      %v674 = vadd.f32 %v577, %v673
      %v675 = vpop.f32.mrb[0].mxu0
      %676 = vdwg.mxu0
      %v677 = vmax.f32 %v659, 0.0
      %v678 = vmax.f32 %v664, 0.0
      %v679 = vmax.f32 %v669, 0.0
      %v680 = vmax.f32 %v674, 0.0
      %v681 = vld [vmem:[%s5] sm:$0xff]
      %v682 = vld [vmem:[#allocation2] sm:$0x1]
      %v684 = vlaneseq
      %v685 = vshrl.u32 %v684, 7
      %v686 = vsub.s32 0, %v685
      %v687 = vrot.slane %v682, %v686
      %v690 = vsel %vm579, %v677, 0
      %v693 = vsel %vm579, %v678, 0
      %v696 = vsel %vm579, %v679, 0
      %v699 = vsel %vm579, %v680, 0
      %701 = vmatprep.subr.mxu0 0.0
      %702 = vmatpush1.msra.mxu0 %v681
      %703 = vmatprep.subr.mxu0 0.0
      %704 = vmatpush1.msra.mxu0 0.0
      %705 = vmatprep.subr.mxu0 0.0
      %706 = vmatpush1.msra.mxu0 0.0
      %707 = vmatprep.subr.mxu0 0.0
      %708 = vmatpush1.msra.mxu0 0.0
      %709 = vmatprep.subr.mxu0 0.0
      %710 = vmatpush1.msra.mxu0 0.0
      %711 = vmatprep.subr.mxu0 0.0
      %712 = vmatpush1.msra.mxu0 0.0
      %713 = vmatprep.subr.mxu0 0.0
      %714 = vmatpush1.msra.mxu0 0.0
      %715 = vmatprep.subr.mxu0 0.0
      %716 = vmatpush1.msra.mxu0 0.0
      %717 = vmatprep.subr.mxu0 0.0
      %718 = vmatpush1.msra.mxu0 0.0
      %719 = vmatprep.subr.mxu0 0.0
      %720 = vmatpush1.msra.mxu0 0.0
      %721 = vmatprep.subr.mxu0 0.0
      %722 = vmatpush1.msra.mxu0 0.0
      %723 = vmatprep.subr.mxu0 0.0
      %724 = vmatpush1.msra.mxu0 0.0
      %725 = vmatprep.subr.mxu0 0.0
      %726 = vmatpush1.msra.mxu0 0.0
      %727 = vmatprep.subr.mxu0 0.0
      %728 = vmatpush1.msra.mxu0 0.0
      %729 = vmatprep.subr.mxu0 0.0
      %730 = vmatpush1.msra.mxu0 0.0
      %731 = vmatprep.subr.mxu0 0.0
      %732 = vmatpush1.msra.mxu0 0.0
      %733 = vmatprep.subr.mxu0 0.0
      %734 = vmatpush1.msra.mxu0 0.0
      %735 = vmatprep.subr.mxu0 0.0
      %736 = vmatpush1.msra.mxu0 0.0
      %737 = vmatprep.subr.mxu0 0.0
      %738 = vmatpush1.msra.mxu0 0.0
      %739 = vmatprep.subr.mxu0 0.0
      %740 = vmatpush1.msra.mxu0 0.0
      %741 = vmatprep.subr.mxu0 0.0
      %742 = vmatpush1.msra.mxu0 0.0
      %743 = vmatprep.subr.mxu0 0.0
      %744 = vmatpush1.msra.mxu0 0.0
      %745 = vmatprep.subr.mxu0 0.0
      %746 = vmatpush1.msra.mxu0 0.0
      %747 = vmatprep.subr.mxu0 0.0
      %748 = vmatpush1.msra.mxu0 0.0
      %749 = vmatprep.subr.mxu0 0.0
      %750 = vmatpush1.msra.mxu0 0.0
      %751 = vmatprep.subr.mxu0 0.0
      %752 = vmatpush1.msra.mxu0 0.0
      %753 = vmatprep.subr.mxu0 0.0
      %754 = vmatpush1.msra.mxu0 0.0
      %755 = vmatprep.subr.mxu0 0.0
      %756 = vmatpush1.msra.mxu0 0.0
      %757 = vmatprep.subr.mxu0 0.0
      %758 = vmatpush1.msra.mxu0 0.0
      %759 = vmatprep.subr.mxu0 0.0
      %760 = vmatpush1.msra.mxu0 0.0
      %761 = vmatprep.subr.mxu0 0.0
      %762 = vmatpush1.msra.mxu0 0.0
      %763 = vmatprep.subr.mxu0 0.0
      %764 = vmatpush1.msra.mxu0 0.0
      %765 = vmatprep.mubr.f32.mxu0 0.0
      %766 = vmatmul.mubr.f32.gmra.mrb[0].mxu0 %v690
      %v767 = vpop.f32.mrb[0].mxu0
      %v768 = vadd.f32 %v687, %v767
      %v769 = vpop.f32.mrb[0].mxu0
      %770 = vmatprep.mubr.f32.mxu0 0.0
      %771 = vmatmul.mubr.f32.gmra.mrb[0].mxu0 %v693
      %v772 = vpop.f32.mrb[0].mxu0
      %v773 = vadd.f32 %v687, %v772
      %v774 = vpop.f32.mrb[0].mxu0
      %775 = vmatprep.mubr.f32.mxu0 0.0
      %776 = vmatmul.mubr.f32.gmra.mrb[0].mxu0 %v696
      %v777 = vpop.f32.mrb[0].mxu0
      %v778 = vadd.f32 %v687, %v777
      %v779 = vpop.f32.mrb[0].mxu0
      %780 = vmatprep.mubr.f32.mxu0 0.0
      %781 = vmatmul.mubr.f32.gmra.mrb[0].mxu0 %v699
      %v782 = vpop.f32.mrb[0].mxu0
      %v783 = vadd.f32 %v687, %v782
      %v784 = vpop.f32.mrb[0].mxu0
      %785 = vdwg.mxu0
      %v786 = vmax.f32 %v768, 0.0
      %v787 = vmax.f32 %v773, 0.0
      %v788 = vmax.f32 %v778, 0.0
      %v789 = vmax.f32 %v783, 0.0
      %vm790 = vcmask 7168
      %791 = vst.msk [vmem:[%s302] sm:$0xff] %vm790, %v786
      %792 = vst.msk [vmem:[%s302 + $0x8] sm:$0xff] %vm790, %v787
      %793 = vst.msk [vmem:[%s302 + $0x10] sm:$0xff] %vm790, %v788
      %794 = vst.msk [vmem:[%s302 + $0x18] sm:$0xff] %vm790, %v789
      %s795 = smul.u32 4, %s25
      %p796 = scmp.lt.s32.totalorder %s24, 1
      %s797 = scalar_select %p796, %s24, 1
      %p798 = scmp.lt.s32.totalorder %s795, 3
      %s799 = scalar_select %p798, %s795, 3
      %s800 = smul.addr %s797, 4
      %s801 = sadd.s32 %s799, %s800
      %s802 = smul.addr %s801, 8
      %s803 = scalar_lea.vmem %s7, %s802
      // Predicated region
      $region49: #{tpu_custom_call.1} parent=47 // pred_check
        %p804 = pneg %p204
      $region50: #{tpu_custom_call.1} parent=47 // pred_check_branch
        %806 = sbr.rel (%p804) target = $region52
      $region51: #{tpu_custom_call.1} parent=47 // pred_region
        %s807 = smul.u32 4, %s25
      $region52: #{tpu_custom_call.1} parent=47 // pred_fallthru
        _
    $region48: #{tpu_custom_call.1} parent=5 // pred_fallthru
      _
    %p808 = scmp.le.s32.totalorder 2, %s15
    // Predicated region
    $region53: #{tpu_custom_call.1} parent=5 // pred_check
      %p809 = pneg %p808
    $region54: #{tpu_custom_call.1} parent=5 // pred_check_branch
      %811 = sbr.rel (%p809) target = $region56
    $region55: #{tpu_custom_call.1} parent=5 // pred_region
      %s812 = ssub.s32 %s15, 2
      // Predicated region
      $region57: #{tpu_custom_call.1} parent=55 // pred_check
        %p813 = pneg %p210
      $region58: #{tpu_custom_call.1} parent=55 // pred_check_branch
        %815 = sbr.rel (%p813) target = $region60
      $region59: #{tpu_custom_call.1} parent=55 // pred_region
        %s816 = smul.u32 4, %s27
        %p817 = scmp.lt.s32.totalorder %s26, 1
        %s818 = scalar_select %p817, %s26, 1
        %p819 = scmp.lt.s32.totalorder %s816, 3
        %s820 = scalar_select %p819, %s816, 3
        %s821 = smul.addr %s818, 4
        %s822 = sadd.s32 %s820, %s821
        %s823 = smul.addr %s822, 8
        %s824 = scalar_lea.vmem %s7, %s823
      $region60: #{tpu_custom_call.1} parent=55 // pred_fallthru
        _
    $region56: #{tpu_custom_call.1} parent=5 // pred_fallthru
      _
  $region6: #{tpu_custom_call.1} parent=0 // loop_footer
    %s19 = sadd.s32 1, %s15
  $region7: #{tpu_custom_call.1} parent=0 // loop_footer_branch
    %14 = sbr.rel target = $region3
  $region8: #{tpu_custom_call.1} parent=0 // loop_exit
    _

</llo_original>
